<compile_context>
chip_gen: v5e
topology: v5e:2x2
jax: 0.10.0
libtpu: 0.0.40
codegen_flags: <defaults>
</compile_context>

<pallas_src>
import jax
import jax.numpy as jnp
from jax import lax
from jax.experimental import pallas as pl
from jax.experimental.pallas import tpu as pltpu

# TODO(synk): `self.model` is an arbitrary user-provided backbone; it is treated
# as identity here (no clean generic Pallas translation for an unspecified module).


def _fc_kernel(x_ref, w_ref, b_ref, o_ref):
    """One row-block: (tm, F) @ (C, F)^T -> (tm, C), bias added in f32."""
    acc = lax.dot_general(
        x_ref[...], w_ref[...],
        dimension_numbers=(((1,), (1,)), ((), ())),   # contract F with F
        preferred_element_type=jnp.float32,
    )
    o_ref[...] = (acc + b_ref[...]).astype(o_ref.dtype)


def _choose_tm(n, f, itemsize, budget_bytes=12 * 1024 * 1024):
    """Row tile: full batch when tiny, else a multiple of 8 capped by a VMEM budget
    for the double-buffered (tm, F) x block (keeps us under v5e's 16 MiB default)."""
    if n <= 8:
        return n
    max_tm = max(budget_bytes // (2 * f * itemsize), 8)
    tm = min(512, n, max_tm)
    return max((tm // 8) * 8, 8)


def fc4_pallas(x_flat, weight, bias, *, compute_dtype=jnp.bfloat16, tm=None):
    """Computes x_flat @ weight.T + bias with an N-tiled Pallas matmul kernel.

    x_flat: (N, F) float32
    weight: (C, F) float32  (PyTorch nn.Linear layout; NOT transposed in the wrapper)
    bias:   (C,)   float32
    Returns (N, C) float32.
    """
    N, F = x_flat.shape
    C = weight.shape[0]

    itemsize = jnp.dtype(compute_dtype).itemsize
    x_c = x_flat.astype(compute_dtype)          # streamed (HBM-bound) operand in bf16
    w_c = weight.astype(compute_dtype)          # (C, F), fully resident in VMEM
    b2d = bias.astype(jnp.float32).reshape(1, C)

    if tm is None:
        tm = _choose_tm(N, F, itemsize)
    grid = (pl.cdiv(N, tm),)

    cost = pl.CostEstimate(
        flops=2 * N * F * C,
        transcendentals=0,
        bytes_accessed=N * F * itemsize + C * F * itemsize + N * C * 4 + C * 4,
    )

    return pl.pallas_call(
        _fc_kernel,
        out_shape=jax.ShapeDtypeStruct((N, C), jnp.float32),
        grid_spec=pltpu.PrefetchScalarGridSpec(
            num_scalar_prefetch=0,
            grid=grid,
            in_specs=[
                pl.BlockSpec((tm, F), lambda i: (i, 0)),   # row-block of x (streamed)
                pl.BlockSpec((C, F), lambda i: (0, 0)),    # whole weight (resident)
                pl.BlockSpec((1, C), lambda i: (0, 0)),    # bias (resident)
            ],
            out_specs=pl.BlockSpec((tm, C), lambda i: (i, 0)),
        ),
        compiler_params=pltpu.CompilerParams(
            dimension_semantics=("parallel",),             # batch axis -> megacore on v7x
        ),
        cost_estimate=cost,
    )(x_c, w_c, b2d)


def fully_connected_forward(x_nchw, weight, bias):
    """Pallas equivalent of fully_connected.forward (backbone = identity)."""
    # model(x) -> identity (see TODO above)
    feats = x_nchw
    # torch.flatten(x, 1)
    N = feats.shape[0]
    out_1 = feats.reshape(N, -1)
    # fc_4(x)
    out_3 = fc4_pallas(out_1, weight, bias)
    return out_1, out_3


if __name__ == "__main__":
    # Small shapes consistent with the module's forward:
    # x: (batch=2, channels=4, H=16, W=16) -> num_ftrs = 4*16*16 = 1024
    batch, channels, spatial = 2, 4, 16
    num_ftrs = channels * spatial * spatial
    num_classes = 8

    key = jax.random.PRNGKey(0)
    kx, kw, kb = jax.random.split(key, 3)

    x = jax.random.normal(kx, (batch, channels, spatial, spatial), dtype=jnp.float32)
    # Deterministic nn.Linear-style init (uniform in +-1/sqrt(fan_in))
    bound = 1.0 / (num_ftrs ** 0.5)
    weight = jax.random.uniform(
        kw, (num_classes, num_ftrs), minval=-bound, maxval=bound, dtype=jnp.float32
    )
    bias = jax.random.uniform(
        kb, (num_classes,), minval=-bound, maxval=bound, dtype=jnp.float32
    )

    out_1, out_3 = fully_connected_forward(x, weight, bias)
    jax.block_until_ready((out_1, out_3))

    # Pure-JAX f32 reference (kernel uses bf16 inputs + f32 accumulation -> loose tol)
    ref_1 = x.reshape(batch, -1)
    ref_3 = ref_1 @ weight.T + bias
    assert out_1.shape == (batch, num_ftrs)
    assert out_3.shape == (batch, num_classes)
    assert jnp.allclose(out_1, ref_1)
    assert jnp.allclose(out_3, ref_3, atol=5e-2, rtol=5e-2)

    print("KERNEL_OK")
</pallas_src>

<mosaic_0001>
module attributes {stable_mosaic.version = 11 : i64} {
  func.func @_fc_kernel(%arg0: i32, %arg1: memref<2x1024xbf16, #tpu.memory_space<vmem>>, %arg2: memref<8x1024xbf16, #tpu.memory_space<vmem>>, %arg3: memref<1x8xf32, #tpu.memory_space<vmem>>, %arg4: memref<2x8xf32, #tpu.memory_space<vmem>>) attributes {dimension_semantics = [#tpu.dimension_semantics<parallel>], iteration_bounds = array<i64: 1>, scalar_prefetch = 0 : i64, scratch_operands = 0 : i64, tpu.core_type = #tpu.core_type<tc>, window_params = [{transform_indices = @transform_0, window_bounds = array<i64: 2, 1024>}, {pipeline_mode = #tpu.pipeline_mode<synchronous>, transform_indices = @transform_1, window_bounds = array<i64: 8, 1024>}, {pipeline_mode = #tpu.pipeline_mode<synchronous>, transform_indices = @transform_2, window_bounds = array<i64: 1, 8>}, {transform_indices = @transform_3, window_bounds = array<i64: 2, 8>}]} {
    %c0 = arith.constant 0 : index
    %c0_0 = arith.constant 0 : index
    %0 = vector.load %arg1[%c0, %c0_0] : memref<2x1024xbf16, #tpu.memory_space<vmem>>, vector<2x1024xbf16>
    %c0_1 = arith.constant 0 : index
    %c0_2 = arith.constant 0 : index
    %1 = vector.load %arg2[%c0_1, %c0_2] : memref<8x1024xbf16, #tpu.memory_space<vmem>>, vector<8x1024xbf16>
    %cst = arith.constant dense<0.000000e+00> : vector<2x8xf32>
    %2 = tpu.matmul %0, %1, %cst {dimension_numbers = #tpu.dot_dimension_numbers<[1], [1], [0], [0], [0, 0, 1, 0], [], []>} : vector<2x1024xbf16>, vector<8x1024xbf16>, vector<2x8xf32> -> vector<2x8xf32>
    %c0_3 = arith.constant 0 : index
    %c0_4 = arith.constant 0 : index
    %3 = vector.load %arg3[%c0_3, %c0_4] : memref<1x8xf32, #tpu.memory_space<vmem>>, vector<1x8xf32>
    %4 = vector.broadcast %3 : vector<1x8xf32> to vector<2x8xf32>
    %5 = arith.addf %2, %4 : vector<2x8xf32>
    %c0_5 = arith.constant 0 : index
    %c0_6 = arith.constant 0 : index
    %6 = vector.load %arg4[%c0_5, %c0_6] : memref<2x8xf32, #tpu.memory_space<vmem>>, vector<2x8xf32>
    tpu.vector_store %arg4[%c0_5, %c0_6], %5 {strides = array<i32>} : memref<2x8xf32, #tpu.memory_space<vmem>>, vector<2x8xf32>,
    return
  }
  func.func @transform_0(%arg0: i32) -> (i32, i32) {
    %c0_i32 = arith.constant 0 : i32
    %c0_i32_0 = arith.constant 0 : i32
    return %arg0, %c0_i32 : i32, i32
  }
  func.func @transform_1(%arg0: i32) -> (i32, i32) {
    %c0_i32 = arith.constant 0 : i32
    %c0_i32_0 = arith.constant 0 : i32
    %c0_i32_1 = arith.constant 0 : i32
    return %c0_i32, %c0_i32_0 : i32, i32
  }
  func.func @transform_2(%arg0: i32) -> (i32, i32) {
    %c0_i32 = arith.constant 0 : i32
    %c0_i32_0 = arith.constant 0 : i32
    %c0_i32_1 = arith.constant 0 : i32
    return %c0_i32, %c0_i32_0 : i32, i32
  }
  func.func @transform_3(%arg0: i32) -> (i32, i32) {
    %c0_i32 = arith.constant 0 : i32
    %c0_i32_0 = arith.constant 0 : i32
    return %arg0, %c0_i32 : i32, i32
  }
}

</mosaic_0001>

<llo_original>
// kernel: tpu_custom_call.1
$region0: #{tpu_custom_call.1}
  #allocation0 [shape = 'u32[]', space=smem, size = 0x4, offset = 0x4, fixed_abs, tag = 'smem constant byte address 0x4 - core index']
  #allocation1 [shape = 'u32[72,128]{1,0:T(1,128)}', space=vmem, size = 0x9000, scoped, tag = 'internal scratch']
  %s0 = inlined_call_operand.hbm [shape: bf16[2,1024], index: 0, kind: input, shape index: {}]
  %s1 = inlined_call_operand.hbm [shape: bf16[8,1024], index: 1, kind: input, shape index: {}]
  %s2 = inlined_call_operand.vmem [shape: f32[1,8], index: 2, kind: input, shape index: {}]
  %s3 = inlined_call_operand.hbm [shape: f32[2,8], index: 3, kind: output, shape index: {}]
  %s4 = sld [smem:[#allocation0]]
  $region30: #{tpu_custom_call.1} parent=0
    _
  %s6 = ssub.s32 1, %s4
  %s7 = scalar_select 0, %s6, %s4
  $region1: #{tpu_custom_call.1} parent=0
    #allocation2 [shape = 'u8[4096]{0}', space=vmem, size = 0x1000, scoped, tag = 'input window, operand 0, single buffered']
    #allocation3 [shape = 's32[1]{0}', space=sflag, size = 0x4, scoped, tag = 'scoped memory for tpu_custom_call.1']
    #allocation4 [shape = 's32[1]{0}', space=sflag, size = 0x4, scoped, tag = 'scoped memory for tpu_custom_call.1']
    #allocation5 [shape = 'u8[16384]{0}', space=vmem, size = 0x4000, scoped, tag = 'input window, operand 1, single buffered']
    #allocation6 [shape = 's32[1]{0}', space=sflag, size = 0x4, scoped, tag = 'scoped memory for tpu_custom_call.1']
    #allocation7 [shape = 'u8[1024]{0}', space=vmem, size = 0x400, scoped, tag = 'output window, operand 0, single buffered']
    %8 = vsyncpa [#allocation3], 0
    %9 = vsyncpa [#allocation6], 0
    %10 = vsyncpa [#allocation4], 0
    // Predicated region
    $region2: #{tpu_custom_call.1} parent=1 // pred_check
      _
    $region3: #{tpu_custom_call.1} parent=1 // pred_check_branch
      %12 = sbr.rel (0) target = $region5
    $region4: #{tpu_custom_call.1} parent=1 // pred_region
      %14 = vsyncadd [#allocation3], 0
      %s16 = sshll.u32 %s0, 4
      %s17 = int_to_ptr.hbm [resolvable:$true] %s16
      %s18 = sshll.u32 [#allocation2], 4
      %s19 = int_to_ptr.vmem [resolvable:$true] %s18
      %21 = dma.hbm_to_vmem [thread:$0]  %s17, 128, %s19, [#allocation3]
    $region5: #{tpu_custom_call.1} parent=1 // pred_fallthru
      _
    // Predicated region
    $region6: #{tpu_custom_call.1} parent=1 // pred_check
      _
    $region7: #{tpu_custom_call.1} parent=1 // pred_check_branch
      %23 = sbr.rel (0) target = $region9
    $region8: #{tpu_custom_call.1} parent=1 // pred_region
      %25 = vsyncadd [#allocation6], 0
      %s27 = sshll.u32 %s1, 4
      %s28 = int_to_ptr.hbm [resolvable:$true] %s27
      %s29 = sshll.u32 [#allocation5], 4
      %s30 = int_to_ptr.vmem [resolvable:$true] %s29
      %32 = dma.hbm_to_vmem [thread:$0]  %s28, 512, %s30, [#allocation6]
    $region9: #{tpu_custom_call.1} parent=1 // pred_fallthru
      _
    // Predicated region
    $region10: #{tpu_custom_call.1} parent=1 // pred_check
      _
    $region11: #{tpu_custom_call.1} parent=1 // pred_check_branch
      %34 = sbr.rel (0) target = $region13
    $region12: #{tpu_custom_call.1} parent=1 // pred_region
      _
    $region13: #{tpu_custom_call.1} parent=1 // pred_fallthru
      _
    // Predicated region
    $region14: #{tpu_custom_call.1} parent=1 // pred_check
      _
    $region15: #{tpu_custom_call.1} parent=1 // pred_check_branch
      %36 = sbr.rel (0) target = $region17
    $region16: #{tpu_custom_call.1} parent=1 // pred_region
      %38 = dma.done [#allocation3], 128
    $region17: #{tpu_custom_call.1} parent=1 // pred_fallthru
      _
    // Predicated region
    $region18: #{tpu_custom_call.1} parent=1 // pred_check
      _
    $region19: #{tpu_custom_call.1} parent=1 // pred_check_branch
      %40 = sbr.rel (0) target = $region21
    $region20: #{tpu_custom_call.1} parent=1 // pred_region
      %42 = dma.done [#allocation6], 512
    $region21: #{tpu_custom_call.1} parent=1 // pred_fallthru
      _
    %v44 = vld [vmem:[#allocation2] sm:$0xff]
    %v45 = vld [vmem:[#allocation5] sm:$0xff]
    %v46 = vld [vmem:[#allocation5 + $0x8] sm:$0xff]
    %v47 = vld [vmem:[#allocation5 + $0x10] sm:$0xff]
    %v48 = vld [vmem:[#allocation5 + $0x18] sm:$0xff]
    %v49 = vld [vmem:[%s2] sm:$0x1]
    %v51 = vperm.slane %v49, 0
    %54 = vst [vmem:[#allocation1] ss:$9 sm:$0xff] %v44
    %v55 = vld [vmem:[#allocation1] sm:$0xff]
    %v56 = vld [vmem:[#allocation1 + $0x9] sm:$0xff]
    %v57 = vld [vmem:[#allocation1 + $0x12] sm:$0xff]
    %v58 = vld [vmem:[#allocation1 + $0x1b] sm:$0xff]
    %v59 = vld [vmem:[#allocation1 + $0x24] sm:$0xff]
    %v60 = vld [vmem:[#allocation1 + $0x2d] sm:$0xff]
    %v61 = vld [vmem:[#allocation1 + $0x36] sm:$0xff]
    %v62 = vld [vmem:[#allocation1 + $0x3f] sm:$0xff]
    %v75 = vunpack.c.l.b16 %v45
    %v76 = vunpack.c.h.b16 %v45
    %v77 = vunpack.c.l.b16 %v46
    %v78 = vunpack.c.h.b16 %v46
    %v79 = vunpack.c.l.b16 %v47
    %v80 = vunpack.c.h.b16 %v47
    %v81 = vunpack.c.l.b16 %v48
    %v82 = vunpack.c.h.b16 %v48
    %v83 = vpack.c.b16 %v75, %v75
    %v84 = vpack.c.b16 %v76, %v76
    %v85 = vpack.c.b16 %v77, %v77
    %v86 = vpack.c.b16 %v78, %v78
    %v87 = vpack.c.b16 %v79, %v79
    %v88 = vpack.c.b16 %v80, %v80
    %v89 = vpack.c.b16 %v81, %v81
    %v90 = vpack.c.b16 %v82, %v82
    %99 = vmatpush.bf16.xpose.msra.mxu0 0
    %100 = vmatpush.bf16.xpose.msra.mxu0 0
    %101 = vmatpush.bf16.xpose.msra.mxu0 0
    %102 = vmatpush.bf16.xpose.msra.mxu0 0
    %103 = vmatpush.bf16.xpose.msra.mxu0 0
    %104 = vmatpush.bf16.xpose.msra.mxu0 0
    %105 = vmatpush.bf16.xpose.msra.mxu0 0
    %106 = vmatpush.bf16.xpose.msra.mxu0 %v83
    %107 = vmatmul.bf16.gmra.mxu0 %v55
    %v108 = vpop.f32.mrf.mxu0
    %v109 = vadd.f32 %v51, %v108
    %v110 = vpop.f32.mrf.mxu0
    %111 = vdwg.mxu0
    %112 = vmatpush.bf16.xpose.msra.mxu0 0
    %113 = vmatpush.bf16.xpose.msra.mxu0 0
    %114 = vmatpush.bf16.xpose.msra.mxu0 0
    %115 = vmatpush.bf16.xpose.msra.mxu0 0
    %116 = vmatpush.bf16.xpose.msra.mxu0 0
    %117 = vmatpush.bf16.xpose.msra.mxu0 0
    %118 = vmatpush.bf16.xpose.msra.mxu0 0
    %119 = vmatpush.bf16.xpose.msra.mxu0 %v84
    %120 = vmatmul.bf16.gmra.mxu0 %v56
    %v121 = vpop.f32.mrf.mxu0
    %v122 = vadd.f32 %v109, %v121
    %v123 = vpop.f32.mrf.mxu0
    %124 = vdwg.mxu0
    %125 = vmatpush.bf16.xpose.msra.mxu0 0
    %126 = vmatpush.bf16.xpose.msra.mxu0 0
    %127 = vmatpush.bf16.xpose.msra.mxu0 0
    %128 = vmatpush.bf16.xpose.msra.mxu0 0
    %129 = vmatpush.bf16.xpose.msra.mxu0 0
    %130 = vmatpush.bf16.xpose.msra.mxu0 0
    %131 = vmatpush.bf16.xpose.msra.mxu0 0
    %132 = vmatpush.bf16.xpose.msra.mxu0 %v85
    %133 = vmatmul.bf16.gmra.mxu0 %v57
    %v134 = vpop.f32.mrf.mxu0
    %v135 = vadd.f32 %v122, %v134
    %v136 = vpop.f32.mrf.mxu0
    %137 = vdwg.mxu0
    %138 = vmatpush.bf16.xpose.msra.mxu0 0
    %139 = vmatpush.bf16.xpose.msra.mxu0 0
    %140 = vmatpush.bf16.xpose.msra.mxu0 0
    %141 = vmatpush.bf16.xpose.msra.mxu0 0
    %142 = vmatpush.bf16.xpose.msra.mxu0 0
    %143 = vmatpush.bf16.xpose.msra.mxu0 0
    %144 = vmatpush.bf16.xpose.msra.mxu0 0
    %145 = vmatpush.bf16.xpose.msra.mxu0 %v86
    %146 = vmatmul.bf16.gmra.mxu0 %v58
    %v147 = vpop.f32.mrf.mxu0
    %v148 = vadd.f32 %v135, %v147
    %v149 = vpop.f32.mrf.mxu0
    %150 = vdwg.mxu0
    %151 = vmatpush.bf16.xpose.msra.mxu0 0
    %152 = vmatpush.bf16.xpose.msra.mxu0 0
    %153 = vmatpush.bf16.xpose.msra.mxu0 0
    %154 = vmatpush.bf16.xpose.msra.mxu0 0
    %155 = vmatpush.bf16.xpose.msra.mxu0 0
    %156 = vmatpush.bf16.xpose.msra.mxu0 0
    %157 = vmatpush.bf16.xpose.msra.mxu0 0
    %158 = vmatpush.bf16.xpose.msra.mxu0 %v87
    %159 = vmatmul.bf16.gmra.mxu0 %v59
    %v160 = vpop.f32.mrf.mxu0
    %v161 = vadd.f32 %v148, %v160
    %v162 = vpop.f32.mrf.mxu0
    %163 = vdwg.mxu0
    %164 = vmatpush.bf16.xpose.msra.mxu0 0
    %165 = vmatpush.bf16.xpose.msra.mxu0 0
    %166 = vmatpush.bf16.xpose.msra.mxu0 0
    %167 = vmatpush.bf16.xpose.msra.mxu0 0
    %168 = vmatpush.bf16.xpose.msra.mxu0 0
    %169 = vmatpush.bf16.xpose.msra.mxu0 0
    %170 = vmatpush.bf16.xpose.msra.mxu0 0
    %171 = vmatpush.bf16.xpose.msra.mxu0 %v88
    %172 = vmatmul.bf16.gmra.mxu0 %v60
    %v173 = vpop.f32.mrf.mxu0
    %v174 = vadd.f32 %v161, %v173
    %v175 = vpop.f32.mrf.mxu0
    %176 = vdwg.mxu0
    %177 = vmatpush.bf16.xpose.msra.mxu0 0
    %178 = vmatpush.bf16.xpose.msra.mxu0 0
    %179 = vmatpush.bf16.xpose.msra.mxu0 0
    %180 = vmatpush.bf16.xpose.msra.mxu0 0
    %181 = vmatpush.bf16.xpose.msra.mxu0 0
    %182 = vmatpush.bf16.xpose.msra.mxu0 0
    %183 = vmatpush.bf16.xpose.msra.mxu0 0
    %184 = vmatpush.bf16.xpose.msra.mxu0 %v89
    %185 = vmatmul.bf16.gmra.mxu0 %v61
    %v186 = vpop.f32.mrf.mxu0
    %v187 = vadd.f32 %v174, %v186
    %v188 = vpop.f32.mrf.mxu0
    %189 = vdwg.mxu0
    %190 = vmatpush.bf16.xpose.msra.mxu0 0
    %191 = vmatpush.bf16.xpose.msra.mxu0 0
    %192 = vmatpush.bf16.xpose.msra.mxu0 0
    %193 = vmatpush.bf16.xpose.msra.mxu0 0
    %194 = vmatpush.bf16.xpose.msra.mxu0 0
    %195 = vmatpush.bf16.xpose.msra.mxu0 0
    %196 = vmatpush.bf16.xpose.msra.mxu0 0
    %197 = vmatpush.bf16.xpose.msra.mxu0 %v90
    %198 = vmatmul.bf16.gmra.mxu0 %v62
    %v199 = vpop.f32.mrf.mxu0
    %v200 = vadd.f32 %v187, %v199
    %v201 = vpop.f32.mrf.mxu0
    %202 = vdwg.mxu0
    %vm203 = vcmask 58368
    %204 = vst.msk [vmem:[#allocation7] sm:$0x3] %vm203, %v200
    // Predicated region
    $region22: #{tpu_custom_call.1} parent=1 // pred_check
      _
    $region23: #{tpu_custom_call.1} parent=1 // pred_check_branch
      %206 = sbr.rel (0) target = $region25
    $region24: #{tpu_custom_call.1} parent=1 // pred_region
      %208 = vsyncadd [#allocation4], 0
      %s210 = sshll.u32 [#allocation7], 4
      %s211 = int_to_ptr.vmem [resolvable:$true] %s210
      %s212 = sshll.u32 %s3, 4
      %s213 = int_to_ptr.hbm [resolvable:$true] %s212
      %215 = dma.vmem_to_hbm [thread:$0]  %s211, 32, %s213, [#allocation4]
    $region25: #{tpu_custom_call.1} parent=1 // pred_fallthru
      _
    // Predicated region
    $region26: #{tpu_custom_call.1} parent=1 // pred_check
      _
    $region27: #{tpu_custom_call.1} parent=1 // pred_check_branch
      %217 = sbr.rel (0) target = $region29
    $region28: #{tpu_custom_call.1} parent=1 // pred_region
      %219 = dma.done [#allocation4], 32
    $region29: #{tpu_custom_call.1} parent=1 // pred_fallthru
      _
    %220 = vsyncpa [#allocation3], 1
    %221 = vsyncpa [#allocation6], 1
    %222 = vsyncpa [#allocation4], 1

</llo_original>
